<compile_context>
chip_gen: v6e
topology: v6e:2x2x1
jax: 0.10.0
libtpu: 0.0.40
codegen_flags: <defaults>
</compile_context>

<pallas_src>
import numpy as np
import jax
import jax.numpy as jnp
from jax.experimental import pallas as pl
from jax.experimental.pallas import tpu as pltpu


def make_kernel_np(k, upsample_factor=1):
    """Mirror of style_function.make_kernel (+ upsample scaling)."""
    k = np.asarray(k, dtype=np.float32)
    if k.ndim == 1:
        k = k[None, :] * k[:, None]
    k = k / k.sum()
    if upsample_factor > 1:
        k = k * (upsample_factor ** 2)
    return k


def _separable_taps(kernel_1d, upsample_factor):
    """Flipped, normalized per-axis taps whose outer product equals the
    flipped 2-D make_kernel result (valid only for 1-D user kernels)."""
    k1 = np.asarray(kernel_1d, dtype=np.float32)
    k1n = k1 / k1.sum()
    if upsample_factor > 1:
        k1n = k1n * float(upsample_factor)   # u per axis -> u**2 total
    kf = k1n[::-1]                           # upfirdn2d flips -> true conv
    return [float(v) for v in kf]


def _make_blur_kernel(*, taps_h, taps_w, taps_2d, crop_t, crop_l, hc, wc,
                      pt, pl_pad, hp, wp, h_out, w_out, tile_nc):
    separable = taps_2d is None
    pb = hp - pt - hc
    pr = wp - pl_pad - wc
    f32 = jnp.float32

    def kernel(x_ref, o_ref, xpad_ref, *scratch):
        # ---- in-kernel zero padding: zero only the border strips, then copy
        #      the (cropped) input slab into the interior of the scratch.
        if pt > 0:
            xpad_ref[0:pt, :, :] = jnp.zeros((pt, wp, tile_nc), f32)
        if pb > 0:
            xpad_ref[pt + hc:hp, :, :] = jnp.zeros((pb, wp, tile_nc), f32)
        if pl_pad > 0:
            xpad_ref[:, 0:pl_pad, :] = jnp.zeros((hp, pl_pad, tile_nc), f32)
        if pr > 0:
            xpad_ref[:, pl_pad + wc:wp, :] = jnp.zeros((hp, pr, tile_nc), f32)
        xpad_ref[pt:pt + hc, pl_pad:pl_pad + wc, :] = (
            x_ref[crop_t:crop_t + hc, crop_l:crop_l + wc, :].astype(f32))

        if separable:
            tmp_ref = scratch[0]
            kh = len(taps_h)
            kw = len(taps_w)
            # H pass: shifts along the leading axis are pure address offsets.
            acc_h = taps_h[0] * xpad_ref[0:h_out, :, :]
            for i in range(1, kh):
                acc_h = acc_h + taps_h[i] * xpad_ref[i:i + h_out, :, :]
            tmp_ref[...] = acc_h
            # W pass: shifts along the sublane axis on the smaller tmp slab.
            acc = taps_w[0] * tmp_ref[:, 0:w_out, :]
            for j in range(1, kw):
                acc = acc + taps_w[j] * tmp_ref[:, j:j + w_out, :]
        else:
            # Non-separable 2-D kernel fallback (full tap loop).
            kh = len(taps_2d)
            kw = len(taps_2d[0])
            acc = jnp.zeros((h_out, w_out, tile_nc), f32)
            for i in range(kh):
                for j in range(kw):
                    acc = acc + taps_2d[i][j] * xpad_ref[i:i + h_out,
                                                         j:j + w_out, :]

        o_ref[...] = acc.astype(o_ref.dtype)

    return kernel


def blur(x, kernel_1d=(1, 3, 3, 1), pad=(2, 1), upsample_factor=1):
    """Equivalent of Blur(kernel_1d, pad, upsample_factor).forward(x).

    x: (N, C, H, W) float32, NCHW like PyTorch.
    Returns (N, C, H_out, W_out) with H_out = H + pad0 + pad1 - kh + 1.
    """
    n, c, h, w = x.shape
    pad0, pad1 = pad

    k_arr = np.asarray(kernel_1d, dtype=np.float32)
    if k_arr.ndim == 1:
        taps_w = _separable_taps(k_arr, upsample_factor)
        taps_h = taps_w
        taps_2d = None
        kh = kw = k_arr.shape[0]
    else:
        k2 = make_kernel_np(k_arr, upsample_factor)
        kf = k2[::-1, ::-1]
        taps_2d = [[float(v) for v in row] for row in kf]
        taps_h = taps_w = None
        kh, kw = k2.shape

    # Padding / cropping geometry (same pads applied to H and W, as upfirdn2d).
    crop_t, crop_b = max(-pad0, 0), max(-pad1, 0)
    pt, pb = max(pad0, 0), max(pad1, 0)
    hc = h - crop_t - crop_b
    wc = w - crop_t - crop_b
    hp = hc + pt + pb
    wp = wc + pt + pb
    h_out = hp - kh + 1
    w_out = wp - kw + 1
    assert hc > 0 and wc > 0 and h_out > 0 and w_out > 0

    nc = n * c
    itemsize = np.dtype(x.dtype).itemsize

    # Channel tile size: one lane-dense slab if it fits; otherwise a multiple
    # of 128 sized so the double-buffered footprint stays v7x-safe (~20 MiB).
    per_chan_bytes = (2 * h * w * itemsize            # double-buffered input
                      + 2 * h_out * w_out * itemsize  # double-buffered output
                      + hp * wp * 4                   # xpad scratch (f32)
                      + h_out * wp * 4)               # tmp scratch (f32)
    budget = 20 * 1024 * 1024
    if nc * per_chan_bytes <= budget:
        tile_nc = nc
    else:
        tile_nc = max(128, min(1024, (budget // per_chan_bytes) // 128 * 128))
    # TODO(synk): for very large H*W a spatial (H) grid axis would be needed
    # in addition to the channel tiling; not required at these model shapes.
    nc_pad = ((nc + tile_nc - 1) // tile_nc) * tile_nc

    # Re-layout: channels on the lane (last) axis -> (H, W, N*C).
    xt = jnp.transpose(x.reshape(nc, h, w), (1, 2, 0))
    if nc_pad != nc:
        xt = jnp.pad(xt, ((0, 0), (0, 0), (0, nc_pad - nc)))

    kernel = _make_blur_kernel(
        taps_h=taps_h, taps_w=taps_w, taps_2d=taps_2d,
        crop_t=crop_t, crop_l=crop_t, hc=hc, wc=wc,
        pt=pt, pl_pad=pt, hp=hp, wp=wp,
        h_out=h_out, w_out=w_out, tile_nc=tile_nc)

    scratch_shapes = [pltpu.VMEM((hp, wp, tile_nc), jnp.float32)]
    if taps_2d is None:
        scratch_shapes.append(pltpu.VMEM((h_out, wp, tile_nc), jnp.float32))

    vmem_limit = int(min(56 * 2 ** 20,
                         max(32 * 2 ** 20, 2 * tile_nc * per_chan_bytes)))

    out = pl.pallas_call(
        kernel,
        out_shape=jax.ShapeDtypeStruct((h_out, w_out, nc_pad), x.dtype),
        grid_spec=pltpu.PrefetchScalarGridSpec(
            num_scalar_prefetch=0,
            grid=(nc_pad // tile_nc,),
            in_specs=[pl.BlockSpec((h, w, tile_nc), lambda i: (0, 0, i))],
            out_specs=pl.BlockSpec((h_out, w_out, tile_nc),
                                   lambda i: (0, 0, i)),
            scratch_shapes=scratch_shapes),
        compiler_params=pltpu.CompilerParams(
            dimension_semantics=("parallel",),
            vmem_limit_bytes=vmem_limit),
    )(xt)

    out = out[:, :, :nc]
    return jnp.transpose(out, (2, 0, 1)).reshape(n, c, h_out, w_out)


def blur_reference(x, kernel_1d=(1, 3, 3, 1), pad=(2, 1), upsample_factor=1):
    """Pure-JAX reference via lax.conv (depthwise), mirroring upfirdn2d."""
    n, c, h, w = x.shape
    pad0, pad1 = pad
    k2 = make_kernel_np(kernel_1d, upsample_factor)
    k_flip = jnp.asarray(k2[::-1, ::-1].copy())
    xp = x.reshape(n * c, 1, h, w)
    xp = jnp.pad(xp, ((0, 0), (0, 0),
                      (max(pad0, 0), max(pad1, 0)),
                      (max(pad0, 0), max(pad1, 0))))
    xp = xp[:, :,
            max(-pad0, 0):xp.shape[2] - max(-pad1, 0),
            max(-pad0, 0):xp.shape[3] - max(-pad1, 0)]
    wgt = k_flip[None, None, :, :]
    out = jax.lax.conv_general_dilated(
        xp, wgt, window_strides=(1, 1), padding="VALID",
        dimension_numbers=("NCHW", "OIHW", "NCHW"))
    return out.reshape(n, c, out.shape[2], out.shape[3])


if __name__ == "__main__":
    key = jax.random.PRNGKey(0)
    x = jax.random.normal(key, (2, 4, 16, 16), dtype=jnp.float32)

    kernel_1d = (1, 3, 3, 1)
    pad = (2, 1)

    y = blur(x, kernel_1d=kernel_1d, pad=pad, upsample_factor=1)
    y = jax.block_until_ready(y)

    y_ref = blur_reference(x, kernel_1d=kernel_1d, pad=pad, upsample_factor=1)
    assert y.shape == y_ref.shape == (2, 4, 16, 16), y.shape
    assert jnp.allclose(y, y_ref, atol=1e-5, rtol=1e-5), "mismatch vs reference"

    print("KERNEL_OK")
</pallas_src>

<mosaic_0001>
module attributes {stable_mosaic.version = 11 : i64} {
  func.func @kernel(%arg0: i32, %arg1: memref<16x16x8xf32, #tpu.memory_space<vmem>>, %arg2: memref<16x16x8xf32, #tpu.memory_space<vmem>>, %arg3: memref<19x19x8xf32, #tpu.memory_space<vmem>>, %arg4: memref<16x19x8xf32, #tpu.memory_space<vmem>>) attributes {dimension_semantics = [#tpu.dimension_semantics<parallel>], iteration_bounds = array<i64: 1>, scalar_prefetch = 0 : i64, scratch_operands = 2 : i64, tpu.core_type = #tpu.core_type<tc>, window_params = [{transform_indices = @transform_0, window_bounds = array<i64: 16, 16, 8>}, {transform_indices = @transform_1, window_bounds = array<i64: 16, 16, 8>}]} {
    %cst = arith.constant 0.000000e+00 : f32
    %0 = vector.broadcast %cst : f32 to vector<2x19x8xf32>
    %c0 = arith.constant 0 : index
    %c0_0 = arith.constant 0 : index
    %c0_1 = arith.constant 0 : index
    %1 = vector.load %arg3[%c0, %c0_0, %c0_1] : memref<19x19x8xf32, #tpu.memory_space<vmem>>, vector<2x19x8xf32>
    tpu.vector_store %arg3[%c0, %c0_0, %c0_1], %0 {strides = array<i32>} : memref<19x19x8xf32, #tpu.memory_space<vmem>>, vector<2x19x8xf32>,
    %cst_2 = arith.constant 0.000000e+00 : f32
    %2 = vector.broadcast %cst_2 : f32 to vector<1x19x8xf32>
    %c18 = arith.constant 18 : index
    %c0_3 = arith.constant 0 : index
    %c0_4 = arith.constant 0 : index
    %3 = vector.load %arg3[%c18, %c0_3, %c0_4] : memref<19x19x8xf32, #tpu.memory_space<vmem>>, vector<1x19x8xf32>
    tpu.vector_store %arg3[%c18, %c0_3, %c0_4], %2 {strides = array<i32>} : memref<19x19x8xf32, #tpu.memory_space<vmem>>, vector<1x19x8xf32>,
    %cst_5 = arith.constant 0.000000e+00 : f32
    %4 = vector.broadcast %cst_5 : f32 to vector<19x2x8xf32>
    %c0_6 = arith.constant 0 : index
    %c0_7 = arith.constant 0 : index
    %c0_8 = arith.constant 0 : index
    %5 = vector.load %arg3[%c0_6, %c0_7, %c0_8] : memref<19x19x8xf32, #tpu.memory_space<vmem>>, vector<19x2x8xf32>
    tpu.vector_store %arg3[%c0_6, %c0_7, %c0_8], %4 {strides = array<i32>} : memref<19x19x8xf32, #tpu.memory_space<vmem>>, vector<19x2x8xf32>,
    %cst_9 = arith.constant 0.000000e+00 : f32
    %6 = vector.broadcast %cst_9 : f32 to vector<19x1x8xf32>
    %c0_10 = arith.constant 0 : index
    %c18_11 = arith.constant 18 : index
    %c0_12 = arith.constant 0 : index
    %7 = vector.load %arg3[%c0_10, %c18_11, %c0_12] : memref<19x19x8xf32, #tpu.memory_space<vmem>>, vector<19x1x8xf32>
    tpu.vector_store %arg3[%c0_10, %c18_11, %c0_12], %6 {strides = array<i32>} : memref<19x19x8xf32, #tpu.memory_space<vmem>>, vector<19x1x8xf32>,
    %c0_13 = arith.constant 0 : index
    %c0_14 = arith.constant 0 : index
    %c0_15 = arith.constant 0 : index
    %8 = vector.load %arg1[%c0_13, %c0_14, %c0_15] : memref<16x16x8xf32, #tpu.memory_space<vmem>>, vector<16x16x8xf32>
    %c2 = arith.constant 2 : index
    %c2_16 = arith.constant 2 : index
    %c0_17 = arith.constant 0 : index
    %9 = vector.load %arg3[%c2, %c2_16, %c0_17] : memref<19x19x8xf32, #tpu.memory_space<vmem>>, vector<16x16x8xf32>
    tpu.vector_store %arg3[%c2, %c2_16, %c0_17], %8 {strides = array<i32>} : memref<19x19x8xf32, #tpu.memory_space<vmem>>, vector<16x16x8xf32>,
    %c0_18 = arith.constant 0 : index
    %c0_19 = arith.constant 0 : index
    %c0_20 = arith.constant 0 : index
    %10 = vector.load %arg3[%c0_18, %c0_19, %c0_20] : memref<19x19x8xf32, #tpu.memory_space<vmem>>, vector<16x19x8xf32>
    %cst_21 = arith.constant 1.250000e-01 : f32
    %11 = vector.broadcast %cst_21 : f32 to vector<16x19x8xf32>
    %12 = arith.mulf %11, %10 : vector<16x19x8xf32>
    %c1 = arith.constant 1 : index
    %c0_22 = arith.constant 0 : index
    %c0_23 = arith.constant 0 : index
    %13 = vector.load %arg3[%c1, %c0_22, %c0_23] : memref<19x19x8xf32, #tpu.memory_space<vmem>>, vector<16x19x8xf32>
    %cst_24 = arith.constant 3.750000e-01 : f32
    %14 = vector.broadcast %cst_24 : f32 to vector<16x19x8xf32>
    %15 = arith.mulf %14, %13 : vector<16x19x8xf32>
    %16 = arith.addf %12, %15 : vector<16x19x8xf32>
    %c2_25 = arith.constant 2 : index
    %c0_26 = arith.constant 0 : index
    %c0_27 = arith.constant 0 : index
    %17 = vector.load %arg3[%c2_25, %c0_26, %c0_27] : memref<19x19x8xf32, #tpu.memory_space<vmem>>, vector<16x19x8xf32>
    %cst_28 = arith.constant 3.750000e-01 : f32
    %18 = vector.broadcast %cst_28 : f32 to vector<16x19x8xf32>
    %19 = arith.mulf %18, %17 : vector<16x19x8xf32>
    %20 = arith.addf %16, %19 : vector<16x19x8xf32>
    %c3 = arith.constant 3 : index
    %c0_29 = arith.constant 0 : index
    %c0_30 = arith.constant 0 : index
    %21 = vector.load %arg3[%c3, %c0_29, %c0_30] : memref<19x19x8xf32, #tpu.memory_space<vmem>>, vector<16x19x8xf32>
    %cst_31 = arith.constant 1.250000e-01 : f32
    %22 = vector.broadcast %cst_31 : f32 to vector<16x19x8xf32>
    %23 = arith.mulf %22, %21 : vector<16x19x8xf32>
    %24 = arith.addf %20, %23 : vector<16x19x8xf32>
    %c0_32 = arith.constant 0 : index
    %c0_33 = arith.constant 0 : index
    %c0_34 = arith.constant 0 : index
    %25 = vector.load %arg4[%c0_32, %c0_33, %c0_34] : memref<16x19x8xf32, #tpu.memory_space<vmem>>, vector<16x19x8xf32>
    tpu.vector_store %arg4[%c0_32, %c0_33, %c0_34], %24 {strides = array<i32>} : memref<16x19x8xf32, #tpu.memory_space<vmem>>, vector<16x19x8xf32>,
    %c0_35 = arith.constant 0 : index
    %c0_36 = arith.constant 0 : index
    %c0_37 = arith.constant 0 : index
    %26 = vector.load %arg4[%c0_35, %c0_36, %c0_37] : memref<16x19x8xf32, #tpu.memory_space<vmem>>, vector<16x16x8xf32>
    %cst_38 = arith.constant 1.250000e-01 : f32
    %27 = vector.broadcast %cst_38 : f32 to vector<16x16x8xf32>
    %28 = arith.mulf %27, %26 : vector<16x16x8xf32>
    %c0_39 = arith.constant 0 : index
    %c1_40 = arith.constant 1 : index
    %c0_41 = arith.constant 0 : index
    %29 = vector.load %arg4[%c0_39, %c1_40, %c0_41] : memref<16x19x8xf32, #tpu.memory_space<vmem>>, vector<16x16x8xf32>
    %cst_42 = arith.constant 3.750000e-01 : f32
    %30 = vector.broadcast %cst_42 : f32 to vector<16x16x8xf32>
    %31 = arith.mulf %30, %29 : vector<16x16x8xf32>
    %32 = arith.addf %28, %31 : vector<16x16x8xf32>
    %c0_43 = arith.constant 0 : index
    %c2_44 = arith.constant 2 : index
    %c0_45 = arith.constant 0 : index
    %33 = vector.load %arg4[%c0_43, %c2_44, %c0_45] : memref<16x19x8xf32, #tpu.memory_space<vmem>>, vector<16x16x8xf32>
    %cst_46 = arith.constant 3.750000e-01 : f32
    %34 = vector.broadcast %cst_46 : f32 to vector<16x16x8xf32>
    %35 = arith.mulf %34, %33 : vector<16x16x8xf32>
    %36 = arith.addf %32, %35 : vector<16x16x8xf32>
    %c0_47 = arith.constant 0 : index
    %c3_48 = arith.constant 3 : index
    %c0_49 = arith.constant 0 : index
    %37 = vector.load %arg4[%c0_47, %c3_48, %c0_49] : memref<16x19x8xf32, #tpu.memory_space<vmem>>, vector<16x16x8xf32>
    %cst_50 = arith.constant 1.250000e-01 : f32
    %38 = vector.broadcast %cst_50 : f32 to vector<16x16x8xf32>
    %39 = arith.mulf %38, %37 : vector<16x16x8xf32>
    %40 = arith.addf %36, %39 : vector<16x16x8xf32>
    %c0_51 = arith.constant 0 : index
    %c0_52 = arith.constant 0 : index
    %c0_53 = arith.constant 0 : index
    %41 = vector.load %arg2[%c0_51, %c0_52, %c0_53] : memref<16x16x8xf32, #tpu.memory_space<vmem>>, vector<16x16x8xf32>
    tpu.vector_store %arg2[%c0_51, %c0_52, %c0_53], %40 {strides = array<i32>} : memref<16x16x8xf32, #tpu.memory_space<vmem>>, vector<16x16x8xf32>,
    return
  }
  func.func @transform_0(%arg0: i32) -> (i32, i32, i32) {
    %c0_i32 = arith.constant 0 : i32
    %c0_i32_0 = arith.constant 0 : i32
    %c0_i32_1 = arith.constant 0 : i32
    return %c0_i32, %c0_i32_0, %arg0 : i32, i32, i32
  }
  func.func @transform_1(%arg0: i32) -> (i32, i32, i32) {
    %c0_i32 = arith.constant 0 : i32
    %c0_i32_0 = arith.constant 0 : i32
    %c0_i32_1 = arith.constant 0 : i32
    return %c0_i32, %c0_i32_0, %arg0 : i32, i32, i32
  }
}

</mosaic_0001>

<llo_original>
// kernel: tpu_custom_call.1
$region0: #{tpu_custom_call.1}
  #allocation0 [shape = 'u32[]', space=smem, size = 0x4, offset = 0x4, fixed_abs, tag = 'smem constant byte address 0x4 - core index']
  #allocation1 [shape = 'u32[144,128]{1,0:T(1,128)}', space=vmem, size = 0x12000, scoped, tag = 'internal scratch']
  #allocation2 [shape = 'f32[19,19,8]{2,1,0:T(8,128)}', space=vmem, size = 0x39000, scoped, tag = 'scratch operand']
  #allocation3 [shape = 'f32[16,19,8]{2,1,0:T(8,128)}', space=vmem, size = 0x30000, scoped, tag = 'scratch operand']
  %s0 = inlined_call_operand.vmem [shape: f32[16,16,8], index: 0, kind: input, shape index: {}]
  %s1 = inlined_call_operand.vmem [shape: f32[16,16,8], index: 1, kind: output, shape index: {}]
  %s2 = sld [smem:[#allocation0]]
  $region14: #{tpu_custom_call.1} parent=0
    _
  %s4 = ssub.s32 1, %s2
  %s5 = scalar_select 0, %s4, %s2
  // Predicated region
  $region2: #{tpu_custom_call.1} parent=0 // pred_check
    _
  $region3: #{tpu_custom_call.1} parent=0 // pred_check_branch
    %7 = sbr.rel (0) target = $region5
  $region4: #{tpu_custom_call.1} parent=0 // pred_region
    _
  $region5: #{tpu_custom_call.1} parent=0 // pred_fallthru
    _
  %vm8 = vcmask 64512
  %9 = vst.msk [vmem:[#allocation2] sm:$0xff] %vm8, 0.0
  %10 = vst.msk [vmem:[#allocation2 + $0x8] sm:$0xff] %vm8, 0.0
  %vm11 = vcmask 59392
  %12 = vst.msk [vmem:[#allocation2 + $0x10] sm:$0x7] %vm11, 0.0
  %13 = vst.msk [vmem:[#allocation2 + $0x18] sm:$0xff] %vm8, 0.0
  %14 = vst.msk [vmem:[#allocation2 + $0x20] sm:$0xff] %vm8, 0.0
  %15 = vst.msk [vmem:[#allocation2 + $0x28] sm:$0x7] %vm11, 0.0
  %s16 = scalar_lea.vmem [#allocation2], 432
  %17 = vst.msk [vmem:[%s16] sm:$0xff] %vm8, 0.0
  %18 = vst.msk [vmem:[%s16 + $0x8] sm:$0xff] %vm8, 0.0
  %19 = vst.msk [vmem:[%s16 + $0x10] sm:$0x7] %vm11, 0.0
  %vm20 = vcmask 58368
  %21 = vst.msk [vmem:[#allocation2] sm:$0x3] %vm20, 0.0
  %22 = vst.msk [vmem:[#allocation2 + $0x18] sm:$0x3] %vm20, 0.0
  %23 = vst.msk [vmem:[#allocation2 + $0x30] sm:$0x3] %vm20, 0.0
  %24 = vst.msk [vmem:[#allocation2 + $0x48] sm:$0x3] %vm20, 0.0
  %25 = vst.msk [vmem:[#allocation2 + $0x60] sm:$0x3] %vm20, 0.0
  %26 = vst.msk [vmem:[#allocation2 + $0x78] sm:$0x3] %vm20, 0.0
  %27 = vst.msk [vmem:[#allocation2 + $0x90] sm:$0x3] %vm20, 0.0
  %28 = vst.msk [vmem:[#allocation2 + $0xa8] sm:$0x3] %vm20, 0.0
  %29 = vst.msk [vmem:[#allocation2 + $0xc0] sm:$0x3] %vm20, 0.0
  %30 = vst.msk [vmem:[#allocation2 + $0xd8] sm:$0x3] %vm20, 0.0
  %31 = vst.msk [vmem:[#allocation2 + $0xf0] sm:$0x3] %vm20, 0.0
  %32 = vst.msk [vmem:[#allocation2 + $0x108] sm:$0x3] %vm20, 0.0
  %33 = vst.msk [vmem:[#allocation2 + $0x120] sm:$0x3] %vm20, 0.0
  %34 = vst.msk [vmem:[#allocation2 + $0x138] sm:$0x3] %vm20, 0.0
  %35 = vst.msk [vmem:[#allocation2 + $0x150] sm:$0x3] %vm20, 0.0
  %36 = vst.msk [vmem:[#allocation2 + $0x168] sm:$0x3] %vm20, 0.0
  %37 = vst.msk [vmem:[#allocation2 + $0x180] sm:$0x3] %vm20, 0.0
  %38 = vst.msk [vmem:[#allocation2 + $0x198] sm:$0x3] %vm20, 0.0
  %39 = vst.msk [vmem:[#allocation2 + $0x1b0] sm:$0x3] %vm20, 0.0
  %vm40 = vcmask 57344
  %41 = vst.msk [vmem:[#allocation2 + $0x12] sm:$0x1] %vm40, 0.0
  %42 = vst.msk [vmem:[#allocation2 + $0x2a] sm:$0x1] %vm40, 0.0
  %43 = vst.msk [vmem:[#allocation2 + $0x42] sm:$0x1] %vm40, 0.0
  %44 = vst.msk [vmem:[#allocation2 + $0x5a] sm:$0x1] %vm40, 0.0
  %45 = vst.msk [vmem:[#allocation2 + $0x72] sm:$0x1] %vm40, 0.0
  %46 = vst.msk [vmem:[#allocation2 + $0x8a] sm:$0x1] %vm40, 0.0
  %47 = vst.msk [vmem:[#allocation2 + $0xa2] sm:$0x1] %vm40, 0.0
  %48 = vst.msk [vmem:[#allocation2 + $0xba] sm:$0x1] %vm40, 0.0
  %49 = vst.msk [vmem:[#allocation2 + $0xd2] sm:$0x1] %vm40, 0.0
  %50 = vst.msk [vmem:[#allocation2 + $0xea] sm:$0x1] %vm40, 0.0
  %51 = vst.msk [vmem:[#allocation2 + $0x102] sm:$0x1] %vm40, 0.0
  %52 = vst.msk [vmem:[#allocation2 + $0x11a] sm:$0x1] %vm40, 0.0
  %53 = vst.msk [vmem:[#allocation2 + $0x132] sm:$0x1] %vm40, 0.0
  %54 = vst.msk [vmem:[#allocation2 + $0x14a] sm:$0x1] %vm40, 0.0
  %55 = vst.msk [vmem:[#allocation2 + $0x162] sm:$0x1] %vm40, 0.0
  %56 = vst.msk [vmem:[#allocation2 + $0x17a] sm:$0x1] %vm40, 0.0
  %57 = vst.msk [vmem:[#allocation2 + $0x192] sm:$0x1] %vm40, 0.0
  %58 = vst.msk [vmem:[#allocation2 + $0x1aa] sm:$0x1] %vm40, 0.0
  %59 = vst.msk [vmem:[#allocation2 + $0x1c2] sm:$0x1] %vm40, 0.0
  %v60 = vld [vmem:[%s0] sm:$0xff]
  %v61 = vld [vmem:[%s0 + $0x8] sm:$0xff]
  %v62 = vld [vmem:[%s0 + $0x10] sm:$0xff]
  %v63 = vld [vmem:[%s0 + $0x18] sm:$0xff]
  %v64 = vld [vmem:[%s0 + $0x20] sm:$0xff]
  %v65 = vld [vmem:[%s0 + $0x28] sm:$0xff]
  %v66 = vld [vmem:[%s0 + $0x30] sm:$0xff]
  %v67 = vld [vmem:[%s0 + $0x38] sm:$0xff]
  %v68 = vld [vmem:[%s0 + $0x40] sm:$0xff]
  %v69 = vld [vmem:[%s0 + $0x48] sm:$0xff]
  %v70 = vld [vmem:[%s0 + $0x50] sm:$0xff]
  %v71 = vld [vmem:[%s0 + $0x58] sm:$0xff]
  %v72 = vld [vmem:[%s0 + $0x60] sm:$0xff]
  %v73 = vld [vmem:[%s0 + $0x68] sm:$0xff]
  %v74 = vld [vmem:[%s0 + $0x70] sm:$0xff]
  %v75 = vld [vmem:[%s0 + $0x78] sm:$0xff]
  %v76 = vld [vmem:[%s0 + $0x80] sm:$0xff]
  %v77 = vld [vmem:[%s0 + $0x88] sm:$0xff]
  %v78 = vld [vmem:[%s0 + $0x90] sm:$0xff]
  %v79 = vld [vmem:[%s0 + $0x98] sm:$0xff]
  %v80 = vld [vmem:[%s0 + $0xa0] sm:$0xff]
  %v81 = vld [vmem:[%s0 + $0xa8] sm:$0xff]
  %v82 = vld [vmem:[%s0 + $0xb0] sm:$0xff]
  %v83 = vld [vmem:[%s0 + $0xb8] sm:$0xff]
  %v84 = vld [vmem:[%s0 + $0xc0] sm:$0xff]
  %v85 = vld [vmem:[%s0 + $0xc8] sm:$0xff]
  %v86 = vld [vmem:[%s0 + $0xd0] sm:$0xff]
  %v87 = vld [vmem:[%s0 + $0xd8] sm:$0xff]
  %v88 = vld [vmem:[%s0 + $0xe0] sm:$0xff]
  %v89 = vld [vmem:[%s0 + $0xe8] sm:$0xff]
  %v90 = vld [vmem:[%s0 + $0xf0] sm:$0xff]
  %v91 = vld [vmem:[%s0 + $0xf8] sm:$0xff]
  %s92 = scalar_lea.vmem [#allocation2], 48
  %93 = vst.msk [vmem:[%s92 + $0x2] sm:$0xff] %vm8, %v60
  %94 = vst.msk [vmem:[%s92 + $0xa] sm:$0xff] %vm8, %v61
  %95 = vst.msk [vmem:[%s92 + $0x1a] sm:$0xff] %vm8, %v62
  %96 = vst.msk [vmem:[%s92 + $0x22] sm:$0xff] %vm8, %v63
  %97 = vst.msk [vmem:[%s92 + $0x32] sm:$0xff] %vm8, %v64
  %98 = vst.msk [vmem:[%s92 + $0x3a] sm:$0xff] %vm8, %v65
  %99 = vst.msk [vmem:[%s92 + $0x4a] sm:$0xff] %vm8, %v66
  %100 = vst.msk [vmem:[%s92 + $0x52] sm:$0xff] %vm8, %v67
  %101 = vst.msk [vmem:[%s92 + $0x62] sm:$0xff] %vm8, %v68
  %102 = vst.msk [vmem:[%s92 + $0x6a] sm:$0xff] %vm8, %v69
  %103 = vst.msk [vmem:[%s92 + $0x7a] sm:$0xff] %vm8, %v70
  %104 = vst.msk [vmem:[%s92 + $0x82] sm:$0xff] %vm8, %v71
  %105 = vst.msk [vmem:[%s92 + $0x92] sm:$0xff] %vm8, %v72
  %106 = vst.msk [vmem:[%s92 + $0x9a] sm:$0xff] %vm8, %v73
  %107 = vst.msk [vmem:[%s92 + $0xaa] sm:$0xff] %vm8, %v74
  %108 = vst.msk [vmem:[%s92 + $0xb2] sm:$0xff] %vm8, %v75
  %109 = vst.msk [vmem:[%s92 + $0xc2] sm:$0xff] %vm8, %v76
  %110 = vst.msk [vmem:[%s92 + $0xca] sm:$0xff] %vm8, %v77
  %111 = vst.msk [vmem:[%s92 + $0xda] sm:$0xff] %vm8, %v78
  %112 = vst.msk [vmem:[%s92 + $0xe2] sm:$0xff] %vm8, %v79
  %113 = vst.msk [vmem:[%s92 + $0xf2] sm:$0xff] %vm8, %v80
  %114 = vst.msk [vmem:[%s92 + $0xfa] sm:$0xff] %vm8, %v81
  %115 = vst.msk [vmem:[%s92 + $0x10a] sm:$0xff] %vm8, %v82
  %116 = vst.msk [vmem:[%s92 + $0x112] sm:$0xff] %vm8, %v83
  %117 = vst.msk [vmem:[%s92 + $0x122] sm:$0xff] %vm8, %v84
  %118 = vst.msk [vmem:[%s92 + $0x12a] sm:$0xff] %vm8, %v85
  %119 = vst.msk [vmem:[%s92 + $0x13a] sm:$0xff] %vm8, %v86
  %120 = vst.msk [vmem:[%s92 + $0x142] sm:$0xff] %vm8, %v87
  %121 = vst.msk [vmem:[%s92 + $0x152] sm:$0xff] %vm8, %v88
  %122 = vst.msk [vmem:[%s92 + $0x15a] sm:$0xff] %vm8, %v89
  %123 = vst.msk [vmem:[%s92 + $0x16a] sm:$0xff] %vm8, %v90
  %124 = vst.msk [vmem:[%s92 + $0x172] sm:$0xff] %vm8, %v91
  %v125 = vld [vmem:[#allocation2] sm:$0xff]
  %v126 = vld [vmem:[#allocation2 + $0x8] sm:$0xff]
  %v127 = vld [vmem:[#allocation2 + $0x10] sm:$0x7]
  %v128 = vld [vmem:[#allocation2 + $0x18] sm:$0xff]
  %v129 = vld [vmem:[#allocation2 + $0x20] sm:$0xff]
  %v130 = vld [vmem:[#allocation2 + $0x28] sm:$0x7]
  %v131 = vld [vmem:[#allocation2 + $0x30] sm:$0xff]
  %v132 = vld [vmem:[#allocation2 + $0x38] sm:$0xff]
  %v133 = vld [vmem:[#allocation2 + $0x40] sm:$0x7]
  %v134 = vld [vmem:[#allocation2 + $0x48] sm:$0xff]
  %v135 = vld [vmem:[#allocation2 + $0x50] sm:$0xff]
  %v136 = vld [vmem:[#allocation2 + $0x58] sm:$0x7]
  %v137 = vld [vmem:[#allocation2 + $0x60] sm:$0xff]
  %v138 = vld [vmem:[#allocation2 + $0x68] sm:$0xff]
  %v139 = vld [vmem:[#allocation2 + $0x70] sm:$0x7]
  %v140 = vld [vmem:[#allocation2 + $0x78] sm:$0xff]
  %v141 = vld [vmem:[#allocation2 + $0x80] sm:$0xff]
  %v142 = vld [vmem:[#allocation2 + $0x88] sm:$0x7]
  %v143 = vld [vmem:[#allocation2 + $0x90] sm:$0xff]
  %v144 = vld [vmem:[#allocation2 + $0x98] sm:$0xff]
  %v145 = vld [vmem:[#allocation2 + $0xa0] sm:$0x7]
  %v146 = vld [vmem:[#allocation2 + $0xa8] sm:$0xff]
  %v147 = vld [vmem:[#allocation2 + $0xb0] sm:$0xff]
  %v148 = vld [vmem:[#allocation2 + $0xb8] sm:$0x7]
  %v149 = vld [vmem:[#allocation2 + $0xc0] sm:$0xff]
  %v150 = vld [vmem:[#allocation2 + $0xc8] sm:$0xff]
  %v151 = vld [vmem:[#allocation2 + $0xd0] sm:$0x7]
  %v152 = vld [vmem:[#allocation2 + $0xd8] sm:$0xff]
  %v153 = vld [vmem:[#allocation2 + $0xe0] sm:$0xff]
  %v154 = vld [vmem:[#allocation2 + $0xe8] sm:$0x7]
  %v155 = vld [vmem:[#allocation2 + $0xf0] sm:$0xff]
  %v156 = vld [vmem:[#allocation2 + $0xf8] sm:$0xff]
  %v157 = vld [vmem:[#allocation2 + $0x100] sm:$0x7]
  %v158 = vld [vmem:[#allocation2 + $0x108] sm:$0xff]
  %v159 = vld [vmem:[#allocation2 + $0x110] sm:$0xff]
  %v160 = vld [vmem:[#allocation2 + $0x118] sm:$0x7]
  %v161 = vld [vmem:[#allocation2 + $0x120] sm:$0xff]
  %v162 = vld [vmem:[#allocation2 + $0x128] sm:$0xff]
  %v163 = vld [vmem:[#allocation2 + $0x130] sm:$0x7]
  %v164 = vld [vmem:[#allocation2 + $0x138] sm:$0xff]
  %v165 = vld [vmem:[#allocation2 + $0x140] sm:$0xff]
  %v166 = vld [vmem:[#allocation2 + $0x148] sm:$0x7]
  %v167 = vld [vmem:[#allocation2 + $0x150] sm:$0xff]
  %v168 = vld [vmem:[#allocation2 + $0x158] sm:$0xff]
  %v169 = vld [vmem:[#allocation2 + $0x160] sm:$0x7]
  %v170 = vld [vmem:[#allocation2 + $0x168] sm:$0xff]
  %v171 = vld [vmem:[#allocation2 + $0x170] sm:$0xff]
  %v172 = vld [vmem:[#allocation2 + $0x178] sm:$0x7]
  %v173 = vmul.f32 %v125, 0.125
  %v174 = vmul.f32 %v126, 0.125
  %v175 = vmul.f32 %v127, 0.125
  %v176 = vmul.f32 %v128, 0.125
  %v177 = vmul.f32 %v129, 0.125
  %v178 = vmul.f32 %v130, 0.125
  %v179 = vmul.f32 %v131, 0.125
  %v180 = vmul.f32 %v132, 0.125
  %v181 = vmul.f32 %v133, 0.125
  %v182 = vmul.f32 %v134, 0.125
  %v183 = vmul.f32 %v135, 0.125
  %v184 = vmul.f32 %v136, 0.125
  %v185 = vmul.f32 %v137, 0.125
  %v186 = vmul.f32 %v138, 0.125
  %v187 = vmul.f32 %v139, 0.125
  %v188 = vmul.f32 %v140, 0.125
  %v189 = vmul.f32 %v141, 0.125
  %v190 = vmul.f32 %v142, 0.125
  %v191 = vmul.f32 %v143, 0.125
  %v192 = vmul.f32 %v144, 0.125
  %v193 = vmul.f32 %v145, 0.125
  %v194 = vmul.f32 %v146, 0.125
  %v195 = vmul.f32 %v147, 0.125
  %v196 = vmul.f32 %v148, 0.125
  %v197 = vmul.f32 %v149, 0.125
  %v198 = vmul.f32 %v150, 0.125
  %v199 = vmul.f32 %v151, 0.125
  %v200 = vmul.f32 %v152, 0.125
  %v201 = vmul.f32 %v153, 0.125
  %v202 = vmul.f32 %v154, 0.125
  %v203 = vmul.f32 %v155, 0.125
  %v204 = vmul.f32 %v156, 0.125
  %v205 = vmul.f32 %v157, 0.125
  %v206 = vmul.f32 %v158, 0.125
  %v207 = vmul.f32 %v159, 0.125
  %v208 = vmul.f32 %v160, 0.125
  %v209 = vmul.f32 %v161, 0.125
  %v210 = vmul.f32 %v162, 0.125
  %v211 = vmul.f32 %v163, 0.125
  %v212 = vmul.f32 %v164, 0.125
  %v213 = vmul.f32 %v165, 0.125
  %v214 = vmul.f32 %v166, 0.125
  %v215 = vmul.f32 %v167, 0.125
  %v216 = vmul.f32 %v168, 0.125
  %v217 = vmul.f32 %v169, 0.125
  %v218 = vmul.f32 %v170, 0.125
  %v219 = vmul.f32 %v171, 0.125
  %v220 = vmul.f32 %v172, 0.125
  %s221 = scalar_lea.vmem [#allocation2], 24
  %v222 = vld [vmem:[%s221] sm:$0xff]
  %v223 = vld [vmem:[%s221 + $0x8] sm:$0xff]
  %v224 = vld [vmem:[%s221 + $0x10] sm:$0x7]
  %v225 = vld [vmem:[%s221 + $0x18] sm:$0xff]
  %v226 = vld [vmem:[%s221 + $0x20] sm:$0xff]
  %v227 = vld [vmem:[%s221 + $0x28] sm:$0x7]
  %v228 = vld [vmem:[%s221 + $0x30] sm:$0xff]
  %v229 = vld [vmem:[%s221 + $0x38] sm:$0xff]
  %v230 = vld [vmem:[%s221 + $0x40] sm:$0x7]
  %v231 = vld [vmem:[%s221 + $0x48] sm:$0xff]
  %v232 = vld [vmem:[%s221 + $0x50] sm:$0xff]
  %v233 = vld [vmem:[%s221 + $0x58] sm:$0x7]
  %v234 = vld [vmem:[%s221 + $0x60] sm:$0xff]
  %v235 = vld [vmem:[%s221 + $0x68] sm:$0xff]
  %v236 = vld [vmem:[%s221 + $0x70] sm:$0x7]
  %v237 = vld [vmem:[%s221 + $0x78] sm:$0xff]
  %v238 = vld [vmem:[%s221 + $0x80] sm:$0xff]
  %v239 = vld [vmem:[%s221 + $0x88] sm:$0x7]
  %v240 = vld [vmem:[%s221 + $0x90] sm:$0xff]
  %v241 = vld [vmem:[%s221 + $0x98] sm:$0xff]
  %v242 = vld [vmem:[%s221 + $0xa0] sm:$0x7]
  %v243 = vld [vmem:[%s221 + $0xa8] sm:$0xff]
  %v244 = vld [vmem:[%s221 + $0xb0] sm:$0xff]
  %v245 = vld [vmem:[%s221 + $0xb8] sm:$0x7]
  %v246 = vld [vmem:[%s221 + $0xc0] sm:$0xff]
  %v247 = vld [vmem:[%s221 + $0xc8] sm:$0xff]
  %v248 = vld [vmem:[%s221 + $0xd0] sm:$0x7]
  %v249 = vld [vmem:[%s221 + $0xd8] sm:$0xff]
  %v250 = vld [vmem:[%s221 + $0xe0] sm:$0xff]
  %v251 = vld [vmem:[%s221 + $0xe8] sm:$0x7]
  %v252 = vld [vmem:[%s221 + $0xf0] sm:$0xff]
  %v253 = vld [vmem:[%s221 + $0xf8] sm:$0xff]
  %v254 = vld [vmem:[%s221 + $0x100] sm:$0x7]
  %v255 = vld [vmem:[%s221 + $0x108] sm:$0xff]
  %v256 = vld [vmem:[%s221 + $0x110] sm:$0xff]
  %v257 = vld [vmem:[%s221 + $0x118] sm:$0x7]
  %v258 = vld [vmem:[%s221 + $0x120] sm:$0xff]
  %v259 = vld [vmem:[%s221 + $0x128] sm:$0xff]
  %v260 = vld [vmem:[%s221 + $0x130] sm:$0x7]
  %v261 = vld [vmem:[%s221 + $0x138] sm:$0xff]
  %v262 = vld [vmem:[%s221 + $0x140] sm:$0xff]
  %v263 = vld [vmem:[%s221 + $0x148] sm:$0x7]
  %v264 = vld [vmem:[%s221 + $0x150] sm:$0xff]
  %v265 = vld [vmem:[%s221 + $0x158] sm:$0xff]
  %v266 = vld [vmem:[%s221 + $0x160] sm:$0x7]
  %v267 = vld [vmem:[%s221 + $0x168] sm:$0xff]
  %v268 = vld [vmem:[%s221 + $0x170] sm:$0xff]
  %v269 = vld [vmem:[%s221 + $0x178] sm:$0x7]
  %v270 = vmul.f32 %v222, 0.375
  %v271 = vmul.f32 %v223, 0.375
  %v272 = vmul.f32 %v224, 0.375
  %v273 = vmul.f32 %v225, 0.375
  %v274 = vmul.f32 %v226, 0.375
  %v275 = vmul.f32 %v227, 0.375
  %v276 = vmul.f32 %v228, 0.375
  %v277 = vmul.f32 %v229, 0.375
  %v278 = vmul.f32 %v230, 0.375
  %v279 = vmul.f32 %v231, 0.375
  %v280 = vmul.f32 %v232, 0.375
  %v281 = vmul.f32 %v233, 0.375
  %v282 = vmul.f32 %v234, 0.375
  %v283 = vmul.f32 %v235, 0.375
  %v284 = vmul.f32 %v236, 0.375
  %v285 = vmul.f32 %v237, 0.375
  %v286 = vmul.f32 %v238, 0.375
  %v287 = vmul.f32 %v239, 0.375
  %v288 = vmul.f32 %v240, 0.375
  %v289 = vmul.f32 %v241, 0.375
  %v290 = vmul.f32 %v242, 0.375
  %v291 = vmul.f32 %v243, 0.375
  %v292 = vmul.f32 %v244, 0.375
  %v293 = vmul.f32 %v245, 0.375
  %v294 = vmul.f32 %v246, 0.375
  %v295 = vmul.f32 %v247, 0.375
  %v296 = vmul.f32 %v248, 0.375
  %v297 = vmul.f32 %v249, 0.375
  %v298 = vmul.f32 %v250, 0.375
  %v299 = vmul.f32 %v251, 0.375
  %v300 = vmul.f32 %v252, 0.375
  %v301 = vmul.f32 %v253, 0.375
  %v302 = vmul.f32 %v254, 0.375
  %v303 = vmul.f32 %v255, 0.375
  %v304 = vmul.f32 %v256, 0.375
  %v305 = vmul.f32 %v257, 0.375
  %v306 = vmul.f32 %v258, 0.375
  %v307 = vmul.f32 %v259, 0.375
  %v308 = vmul.f32 %v260, 0.375
  %v309 = vmul.f32 %v261, 0.375
  %v310 = vmul.f32 %v262, 0.375
  %v311 = vmul.f32 %v263, 0.375
  %v312 = vmul.f32 %v264, 0.375
  %v313 = vmul.f32 %v265, 0.375
  %v314 = vmul.f32 %v266, 0.375
  %v315 = vmul.f32 %v267, 0.375
  %v316 = vmul.f32 %v268, 0.375
  %v317 = vmul.f32 %v269, 0.375
  %v318 = vadd.f32 %v173, %v270
  %v319 = vadd.f32 %v174, %v271
  %v320 = vadd.f32 %v175, %v272
  %v321 = vadd.f32 %v176, %v273
  %v322 = vadd.f32 %v177, %v274
  %v323 = vadd.f32 %v178, %v275
  %v324 = vadd.f32 %v179, %v276
  %v325 = vadd.f32 %v180, %v277
  %v326 = vadd.f32 %v181, %v278
  %v327 = vadd.f32 %v182, %v279
  %v328 = vadd.f32 %v183, %v280
  %v329 = vadd.f32 %v184, %v281
  %v330 = vadd.f32 %v185, %v282
  %v331 = vadd.f32 %v186, %v283
  %v332 = vadd.f32 %v187, %v284
  %v333 = vadd.f32 %v188, %v285
  %v334 = vadd.f32 %v189, %v286
  %v335 = vadd.f32 %v190, %v287
  %v336 = vadd.f32 %v191, %v288
  %v337 = vadd.f32 %v192, %v289
  %v338 = vadd.f32 %v193, %v290
  %v339 = vadd.f32 %v194, %v291
  %v340 = vadd.f32 %v195, %v292
  %v341 = vadd.f32 %v196, %v293
  %v342 = vadd.f32 %v197, %v294
  %v343 = vadd.f32 %v198, %v295
  %v344 = vadd.f32 %v199, %v296
  %v345 = vadd.f32 %v200, %v297
  %v346 = vadd.f32 %v201, %v298
  %v347 = vadd.f32 %v202, %v299
  %v348 = vadd.f32 %v203, %v300
  %v349 = vadd.f32 %v204, %v301
  %v350 = vadd.f32 %v205, %v302
  %v351 = vadd.f32 %v206, %v303
  %v352 = vadd.f32 %v207, %v304
  %v353 = vadd.f32 %v208, %v305
  %v354 = vadd.f32 %v209, %v306
  %v355 = vadd.f32 %v210, %v307
  %v356 = vadd.f32 %v211, %v308
  %v357 = vadd.f32 %v212, %v309
  %v358 = vadd.f32 %v213, %v310
  %v359 = vadd.f32 %v214, %v311
  %v360 = vadd.f32 %v215, %v312
  %v361 = vadd.f32 %v216, %v313
  %v362 = vadd.f32 %v217, %v314
  %v363 = vadd.f32 %v218, %v315
  %v364 = vadd.f32 %v219, %v316
  %v365 = vadd.f32 %v220, %v317
  %v366 = vld [vmem:[%s92] sm:$0xff]
  %v367 = vld [vmem:[%s92 + $0x8] sm:$0xff]
  %v368 = vld [vmem:[%s92 + $0x10] sm:$0x7]
  %v369 = vld [vmem:[%s92 + $0x18] sm:$0xff]
  %v370 = vld [vmem:[%s92 + $0x20] sm:$0xff]
  %v371 = vld [vmem:[%s92 + $0x28] sm:$0x7]
  %v372 = vld [vmem:[%s92 + $0x30] sm:$0xff]
  %v373 = vld [vmem:[%s92 + $0x38] sm:$0xff]
  %v374 = vld [vmem:[%s92 + $0x40] sm:$0x7]
  %v375 = vld [vmem:[%s92 + $0x48] sm:$0xff]
  %v376 = vld [vmem:[%s92 + $0x50] sm:$0xff]
  %v377 = vld [vmem:[%s92 + $0x58] sm:$0x7]
  %v378 = vld [vmem:[%s92 + $0x60] sm:$0xff]
  %v379 = vld [vmem:[%s92 + $0x68] sm:$0xff]
  %v380 = vld [vmem:[%s92 + $0x70] sm:$0x7]
  %v381 = vld [vmem:[%s92 + $0x78] sm:$0xff]
  %v382 = vld [vmem:[%s92 + $0x80] sm:$0xff]
  %v383 = vld [vmem:[%s92 + $0x88] sm:$0x7]
  %v384 = vld [vmem:[%s92 + $0x90] sm:$0xff]
  %v385 = vld [vmem:[%s92 + $0x98] sm:$0xff]
  %v386 = vld [vmem:[%s92 + $0xa0] sm:$0x7]
  %v387 = vld [vmem:[%s92 + $0xa8] sm:$0xff]
  %v388 = vld [vmem:[%s92 + $0xb0] sm:$0xff]
  %v389 = vld [vmem:[%s92 + $0xb8] sm:$0x7]
  %v390 = vld [vmem:[%s92 + $0xc0] sm:$0xff]
  %v391 = vld [vmem:[%s92 + $0xc8] sm:$0xff]
  %v392 = vld [vmem:[%s92 + $0xd0] sm:$0x7]
  %v393 = vld [vmem:[%s92 + $0xd8] sm:$0xff]
  %v394 = vld [vmem:[%s92 + $0xe0] sm:$0xff]
  %v395 = vld [vmem:[%s92 + $0xe8] sm:$0x7]
  %v396 = vld [vmem:[%s92 + $0xf0] sm:$0xff]
  %v397 = vld [vmem:[%s92 + $0xf8] sm:$0xff]
  %v398 = vld [vmem:[%s92 + $0x100] sm:$0x7]
  %v399 = vld [vmem:[%s92 + $0x108] sm:$0xff]
  %v400 = vld [vmem:[%s92 + $0x110] sm:$0xff]
  %v401 = vld [vmem:[%s92 + $0x118] sm:$0x7]
  %v402 = vld [vmem:[%s92 + $0x120] sm:$0xff]
  %v403 = vld [vmem:[%s92 + $0x128] sm:$0xff]
  %v404 = vld [vmem:[%s92 + $0x130] sm:$0x7]
  %v405 = vld [vmem:[%s92 + $0x138] sm:$0xff]
  %v406 = vld [vmem:[%s92 + $0x140] sm:$0xff]
  %v407 = vld [vmem:[%s92 + $0x148] sm:$0x7]
  %v408 = vld [vmem:[%s92 + $0x150] sm:$0xff]
  %v409 = vld [vmem:[%s92 + $0x158] sm:$0xff]
  %v410 = vld [vmem:[%s92 + $0x160] sm:$0x7]
  %v411 = vld [vmem:[%s92 + $0x168] sm:$0xff]
  %v412 = vld [vmem:[%s92 + $0x170] sm:$0xff]
  %v413 = vld [vmem:[%s92 + $0x178] sm:$0x7]
  %v414 = vmul.f32 %v366, 0.375
  %v415 = vmul.f32 %v367, 0.375
  %v416 = vmul.f32 %v368, 0.375
  %v417 = vmul.f32 %v369, 0.375
  %v418 = vmul.f32 %v370, 0.375
  %v419 = vmul.f32 %v371, 0.375
  %v420 = vmul.f32 %v372, 0.375
  %v421 = vmul.f32 %v373, 0.375
  %v422 = vmul.f32 %v374, 0.375
  %v423 = vmul.f32 %v375, 0.375
  %v424 = vmul.f32 %v376, 0.375
  %v425 = vmul.f32 %v377, 0.375
  %v426 = vmul.f32 %v378, 0.375
  %v427 = vmul.f32 %v379, 0.375
  %v428 = vmul.f32 %v380, 0.375
  %v429 = vmul.f32 %v381, 0.375
  %v430 = vmul.f32 %v382, 0.375
  %v431 = vmul.f32 %v383, 0.375
  %v432 = vmul.f32 %v384, 0.375
  %v433 = vmul.f32 %v385, 0.375
  %v434 = vmul.f32 %v386, 0.375
  %v435 = vmul.f32 %v387, 0.375
  %v436 = vmul.f32 %v388, 0.375
  %v437 = vmul.f32 %v389, 0.375
  %v438 = vmul.f32 %v390, 0.375
  %v439 = vmul.f32 %v391, 0.375
  %v440 = vmul.f32 %v392, 0.375
  %v441 = vmul.f32 %v393, 0.375
  %v442 = vmul.f32 %v394, 0.375
  %v443 = vmul.f32 %v395, 0.375
  %v444 = vmul.f32 %v396, 0.375
  %v445 = vmul.f32 %v397, 0.375
  %v446 = vmul.f32 %v398, 0.375
  %v447 = vmul.f32 %v399, 0.375
  %v448 = vmul.f32 %v400, 0.375
  %v449 = vmul.f32 %v401, 0.375
  %v450 = vmul.f32 %v402, 0.375
  %v451 = vmul.f32 %v403, 0.375
  %v452 = vmul.f32 %v404, 0.375
  %v453 = vmul.f32 %v405, 0.375
  %v454 = vmul.f32 %v406, 0.375
  %v455 = vmul.f32 %v407, 0.375
  %v456 = vmul.f32 %v408, 0.375
  %v457 = vmul.f32 %v409, 0.375
  %v458 = vmul.f32 %v410, 0.375
  %v459 = vmul.f32 %v411, 0.375
  %v460 = vmul.f32 %v412, 0.375
  %v461 = vmul.f32 %v413, 0.375
  %v462 = vadd.f32 %v318, %v414
  %v463 = vadd.f32 %v319, %v415
  %v464 = vadd.f32 %v320, %v416
  %v465 = vadd.f32 %v321, %v417
  %v466 = vadd.f32 %v322, %v418
  %v467 = vadd.f32 %v323, %v419
  %v468 = vadd.f32 %v324, %v420
  %v469 = vadd.f32 %v325, %v421
  %v470 = vadd.f32 %v326, %v422
  %v471 = vadd.f32 %v327, %v423
  %v472 = vadd.f32 %v328, %v424
  %v473 = vadd.f32 %v329, %v425
  %v474 = vadd.f32 %v330, %v426
  %v475 = vadd.f32 %v331, %v427
  %v476 = vadd.f32 %v332, %v428
  %v477 = vadd.f32 %v333, %v429
  %v478 = vadd.f32 %v334, %v430
  %v479 = vadd.f32 %v335, %v431
  %v480 = vadd.f32 %v336, %v432
  %v481 = vadd.f32 %v337, %v433
  %v482 = vadd.f32 %v338, %v434
  %v483 = vadd.f32 %v339, %v435
  %v484 = vadd.f32 %v340, %v436
  %v485 = vadd.f32 %v341, %v437
  %v486 = vadd.f32 %v342, %v438
  %v487 = vadd.f32 %v343, %v439
  %v488 = vadd.f32 %v344, %v440
  %v489 = vadd.f32 %v345, %v441
  %v490 = vadd.f32 %v346, %v442
  %v491 = vadd.f32 %v347, %v443
  %v492 = vadd.f32 %v348, %v444
  %v493 = vadd.f32 %v349, %v445
  %v494 = vadd.f32 %v350, %v446
  %v495 = vadd.f32 %v351, %v447
  %v496 = vadd.f32 %v352, %v448
  %v497 = vadd.f32 %v353, %v449
  %v498 = vadd.f32 %v354, %v450
  %v499 = vadd.f32 %v355, %v451
  %v500 = vadd.f32 %v356, %v452
  %v501 = vadd.f32 %v357, %v453
  %v502 = vadd.f32 %v358, %v454
  %v503 = vadd.f32 %v359, %v455
  %v504 = vadd.f32 %v360, %v456
  %v505 = vadd.f32 %v361, %v457
  %v506 = vadd.f32 %v362, %v458
  %v507 = vadd.f32 %v363, %v459
  %v508 = vadd.f32 %v364, %v460
  %v509 = vadd.f32 %v365, %v461
  %s510 = scalar_lea.vmem [#allocation2], 72
  %v511 = vld [vmem:[%s510] sm:$0xff]
  %v512 = vld [vmem:[%s510 + $0x8] sm:$0xff]
  %v513 = vld [vmem:[%s510 + $0x10] sm:$0x7]
  %v514 = vld [vmem:[%s510 + $0x18] sm:$0xff]
  %v515 = vld [vmem:[%s510 + $0x20] sm:$0xff]
  %v516 = vld [vmem:[%s510 + $0x28] sm:$0x7]
  %v517 = vld [vmem:[%s510 + $0x30] sm:$0xff]
  %v518 = vld [vmem:[%s510 + $0x38] sm:$0xff]
  %v519 = vld [vmem:[%s510 + $0x40] sm:$0x7]
  %v520 = vld [vmem:[%s510 + $0x48] sm:$0xff]
  %v521 = vld [vmem:[%s510 + $0x50] sm:$0xff]
  %v522 = vld [vmem:[%s510 + $0x58] sm:$0x7]
  %v523 = vld [vmem:[%s510 + $0x60] sm:$0xff]
  %v524 = vld [vmem:[%s510 + $0x68] sm:$0xff]
  %v525 = vld [vmem:[%s510 + $0x70] sm:$0x7]
  %v526 = vld [vmem:[%s510 + $0x78] sm:$0xff]
  %v527 = vld [vmem:[%s510 + $0x80] sm:$0xff]
  %v528 = vld [vmem:[%s510 + $0x88] sm:$0x7]
  %v529 = vld [vmem:[%s510 + $0x90] sm:$0xff]
  %v530 = vld [vmem:[%s510 + $0x98] sm:$0xff]
  %v531 = vld [vmem:[%s510 + $0xa0] sm:$0x7]
  %v532 = vld [vmem:[%s510 + $0xa8] sm:$0xff]
  %v533 = vld [vmem:[%s510 + $0xb0] sm:$0xff]
  %v534 = vld [vmem:[%s510 + $0xb8] sm:$0x7]
  %v535 = vld [vmem:[%s510 + $0xc0] sm:$0xff]
  %v536 = vld [vmem:[%s510 + $0xc8] sm:$0xff]
  %v537 = vld [vmem:[%s510 + $0xd0] sm:$0x7]
  %v538 = vld [vmem:[%s510 + $0xd8] sm:$0xff]
  %v539 = vld [vmem:[%s510 + $0xe0] sm:$0xff]
  %v540 = vld [vmem:[%s510 + $0xe8] sm:$0x7]
  %v541 = vld [vmem:[%s510 + $0xf0] sm:$0xff]
  %v542 = vld [vmem:[%s510 + $0xf8] sm:$0xff]
  %v543 = vld [vmem:[%s510 + $0x100] sm:$0x7]
  %v544 = vld [vmem:[%s510 + $0x108] sm:$0xff]
  %v545 = vld [vmem:[%s510 + $0x110] sm:$0xff]
  %v546 = vld [vmem:[%s510 + $0x118] sm:$0x7]
  %v547 = vld [vmem:[%s510 + $0x120] sm:$0xff]
  %v548 = vld [vmem:[%s510 + $0x128] sm:$0xff]
  %v549 = vld [vmem:[%s510 + $0x130] sm:$0x7]
  %v550 = vld [vmem:[%s510 + $0x138] sm:$0xff]
  %v551 = vld [vmem:[%s510 + $0x140] sm:$0xff]
  %v552 = vld [vmem:[%s510 + $0x148] sm:$0x7]
  %v553 = vld [vmem:[%s510 + $0x150] sm:$0xff]
  %v554 = vld [vmem:[%s510 + $0x158] sm:$0xff]
  %v555 = vld [vmem:[%s510 + $0x160] sm:$0x7]
  %v556 = vld [vmem:[%s510 + $0x168] sm:$0xff]
  %v557 = vld [vmem:[%s510 + $0x170] sm:$0xff]
  %v558 = vld [vmem:[%s510 + $0x178] sm:$0x7]
  %v559 = vmul.f32 %v511, 0.125
  %v560 = vmul.f32 %v512, 0.125
  %v561 = vmul.f32 %v513, 0.125
  %v562 = vmul.f32 %v514, 0.125
  %v563 = vmul.f32 %v515, 0.125
  %v564 = vmul.f32 %v516, 0.125
  %v565 = vmul.f32 %v517, 0.125
  %v566 = vmul.f32 %v518, 0.125
  %v567 = vmul.f32 %v519, 0.125
  %v568 = vmul.f32 %v520, 0.125
  %v569 = vmul.f32 %v521, 0.125
  %v570 = vmul.f32 %v522, 0.125
  %v571 = vmul.f32 %v523, 0.125
  %v572 = vmul.f32 %v524, 0.125
  %v573 = vmul.f32 %v525, 0.125
  %v574 = vmul.f32 %v526, 0.125
  %v575 = vmul.f32 %v527, 0.125
  %v576 = vmul.f32 %v528, 0.125
  %v577 = vmul.f32 %v529, 0.125
  %v578 = vmul.f32 %v530, 0.125
  %v579 = vmul.f32 %v531, 0.125
  %v580 = vmul.f32 %v532, 0.125
  %v581 = vmul.f32 %v533, 0.125
  %v582 = vmul.f32 %v534, 0.125
  %v583 = vmul.f32 %v535, 0.125
  %v584 = vmul.f32 %v536, 0.125
  %v585 = vmul.f32 %v537, 0.125
  %v586 = vmul.f32 %v538, 0.125
  %v587 = vmul.f32 %v539, 0.125
  %v588 = vmul.f32 %v540, 0.125
  %v589 = vmul.f32 %v541, 0.125
  %v590 = vmul.f32 %v542, 0.125
  %v591 = vmul.f32 %v543, 0.125
  %v592 = vmul.f32 %v544, 0.125
  %v593 = vmul.f32 %v545, 0.125
  %v594 = vmul.f32 %v546, 0.125
  %v595 = vmul.f32 %v547, 0.125
  %v596 = vmul.f32 %v548, 0.125
  %v597 = vmul.f32 %v549, 0.125
  %v598 = vmul.f32 %v550, 0.125
  %v599 = vmul.f32 %v551, 0.125
  %v600 = vmul.f32 %v552, 0.125
  %v601 = vmul.f32 %v553, 0.125
  %v602 = vmul.f32 %v554, 0.125
  %v603 = vmul.f32 %v555, 0.125
  %v604 = vmul.f32 %v556, 0.125
  %v605 = vmul.f32 %v557, 0.125
  %v606 = vmul.f32 %v558, 0.125
  %v607 = vadd.f32 %v462, %v559
  %v608 = vadd.f32 %v463, %v560
  %v609 = vadd.f32 %v464, %v561
  %v610 = vadd.f32 %v465, %v562
  %v611 = vadd.f32 %v466, %v563
  %v612 = vadd.f32 %v467, %v564
  %v613 = vadd.f32 %v468, %v565
  %v614 = vadd.f32 %v469, %v566
  %v615 = vadd.f32 %v470, %v567
  %v616 = vadd.f32 %v471, %v568
  %v617 = vadd.f32 %v472, %v569
  %v618 = vadd.f32 %v473, %v570
  %v619 = vadd.f32 %v474, %v571
  %v620 = vadd.f32 %v475, %v572
  %v621 = vadd.f32 %v476, %v573
  %v622 = vadd.f32 %v477, %v574
  %v623 = vadd.f32 %v478, %v575
  %v624 = vadd.f32 %v479, %v576
  %v625 = vadd.f32 %v480, %v577
  %v626 = vadd.f32 %v481, %v578
  %v627 = vadd.f32 %v482, %v579
  %v628 = vadd.f32 %v483, %v580
  %v629 = vadd.f32 %v484, %v581
  %v630 = vadd.f32 %v485, %v582
  %v631 = vadd.f32 %v486, %v583
  %v632 = vadd.f32 %v487, %v584
  %v633 = vadd.f32 %v488, %v585
  %v634 = vadd.f32 %v489, %v586
  %v635 = vadd.f32 %v490, %v587
  %v636 = vadd.f32 %v491, %v588
  %v637 = vadd.f32 %v492, %v589
  %v638 = vadd.f32 %v493, %v590
  %v639 = vadd.f32 %v494, %v591
  %v640 = vadd.f32 %v495, %v592
  %v641 = vadd.f32 %v496, %v593
  %v642 = vadd.f32 %v497, %v594
  %v643 = vadd.f32 %v498, %v595
  %v644 = vadd.f32 %v499, %v596
  %v645 = vadd.f32 %v500, %v597
  %v646 = vadd.f32 %v501, %v598
  %v647 = vadd.f32 %v502, %v599
  %v648 = vadd.f32 %v503, %v600
  %v649 = vadd.f32 %v504, %v601
  %v650 = vadd.f32 %v505, %v602
  %v651 = vadd.f32 %v506, %v603
  %v652 = vadd.f32 %v507, %v604
  %v653 = vadd.f32 %v508, %v605
  %v654 = vadd.f32 %v509, %v606
  %655 = vst.msk [vmem:[#allocation3] sm:$0xff] %vm8, %v607
  %656 = vst.msk [vmem:[#allocation3 + $0x8] sm:$0xff] %vm8, %v608
  %657 = vst.msk [vmem:[#allocation3 + $0x10] sm:$0x7] %vm11, %v609
  %658 = vst.msk [vmem:[#allocation3 + $0x18] sm:$0xff] %vm8, %v610
  %659 = vst.msk [vmem:[#allocation3 + $0x20] sm:$0xff] %vm8, %v611
  %660 = vst.msk [vmem:[#allocation3 + $0x28] sm:$0x7] %vm11, %v612
  %661 = vst.msk [vmem:[#allocation3 + $0x30] sm:$0xff] %vm8, %v613
  %662 = vst.msk [vmem:[#allocation3 + $0x38] sm:$0xff] %vm8, %v614
  %663 = vst.msk [vmem:[#allocation3 + $0x40] sm:$0x7] %vm11, %v615
  %664 = vst.msk [vmem:[#allocation3 + $0x48] sm:$0xff] %vm8, %v616
  %665 = vst.msk [vmem:[#allocation3 + $0x50] sm:$0xff] %vm8, %v617
  %666 = vst.msk [vmem:[#allocation3 + $0x58] sm:$0x7] %vm11, %v618
  %667 = vst.msk [vmem:[#allocation3 + $0x60] sm:$0xff] %vm8, %v619
  %668 = vst.msk [vmem:[#allocation3 + $0x68] sm:$0xff] %vm8, %v620
  %669 = vst.msk [vmem:[#allocation3 + $0x70] sm:$0x7] %vm11, %v621
  %670 = vst.msk [vmem:[#allocation3 + $0x78] sm:$0xff] %vm8, %v622
  %671 = vst.msk [vmem:[#allocation3 + $0x80] sm:$0xff] %vm8, %v623
  %672 = vst.msk [vmem:[#allocation3 + $0x88] sm:$0x7] %vm11, %v624
  %673 = vst.msk [vmem:[#allocation3 + $0x90] sm:$0xff] %vm8, %v625
  %674 = vst.msk [vmem:[#allocation3 + $0x98] sm:$0xff] %vm8, %v626
  %675 = vst.msk [vmem:[#allocation3 + $0xa0] sm:$0x7] %vm11, %v627
  %676 = vst.msk [vmem:[#allocation3 + $0xa8] sm:$0xff] %vm8, %v628
  %677 = vst.msk [vmem:[#allocation3 + $0xb0] sm:$0xff] %vm8, %v629
  %678 = vst.msk [vmem:[#allocation3 + $0xb8] sm:$0x7] %vm11, %v630
  %679 = vst.msk [vmem:[#allocation3 + $0xc0] sm:$0xff] %vm8, %v631
  %680 = vst.msk [vmem:[#allocation3 + $0xc8] sm:$0xff] %vm8, %v632
  %681 = vst.msk [vmem:[#allocation3 + $0xd0] sm:$0x7] %vm11, %v633
  %682 = vst.msk [vmem:[#allocation3 + $0xd8] sm:$0xff] %vm8, %v634
  %683 = vst.msk [vmem:[#allocation3 + $0xe0] sm:$0xff] %vm8, %v635
  %684 = vst.msk [vmem:[#allocation3 + $0xe8] sm:$0x7] %vm11, %v636
  %685 = vst.msk [vmem:[#allocation3 + $0xf0] sm:$0xff] %vm8, %v637
  %686 = vst.msk [vmem:[#allocation3 + $0xf8] sm:$0xff] %vm8, %v638
  %687 = vst.msk [vmem:[#allocation3 + $0x100] sm:$0x7] %vm11, %v639
  %688 = vst.msk [vmem:[#allocation3 + $0x108] sm:$0xff] %vm8, %v640
  %689 = vst.msk [vmem:[#allocation3 + $0x110] sm:$0xff] %vm8, %v641
  %690 = vst.msk [vmem:[#allocation3 + $0x118] sm:$0x7] %vm11, %v642
  %691 = vst.msk [vmem:[#allocation3 + $0x120] sm:$0xff] %vm8, %v643
  %692 = vst.msk [vmem:[#allocation3 + $0x128] sm:$0xff] %vm8, %v644
  %693 = vst.msk [vmem:[#allocation3 + $0x130] sm:$0x7] %vm11, %v645
  %694 = vst.msk [vmem:[#allocation3 + $0x138] sm:$0xff] %vm8, %v646
  %695 = vst.msk [vmem:[#allocation3 + $0x140] sm:$0xff] %vm8, %v647
  %696 = vst.msk [vmem:[#allocation3 + $0x148] sm:$0x7] %vm11, %v648
  %697 = vst.msk [vmem:[#allocation3 + $0x150] sm:$0xff] %vm8, %v649
  %698 = vst.msk [vmem:[#allocation3 + $0x158] sm:$0xff] %vm8, %v650
  %699 = vst.msk [vmem:[#allocation3 + $0x160] sm:$0x7] %vm11, %v651
  %700 = vst.msk [vmem:[#allocation3 + $0x168] sm:$0xff] %vm8, %v652
  %701 = vst.msk [vmem:[#allocation3 + $0x170] sm:$0xff] %vm8, %v653
  %702 = vst.msk [vmem:[#allocation3 + $0x178] sm:$0x7] %vm11, %v654
  %v703 = vld [vmem:[#allocation3] sm:$0xff]
  %v704 = vld [vmem:[#allocation3 + $0x8] sm:$0xff]
  %v705 = vld [vmem:[#allocation3 + $0x18] sm:$0xff]
  %v706 = vld [vmem:[#allocation3 + $0x20] sm:$0xff]
  %v707 = vld [vmem:[#allocation3 + $0x30] sm:$0xff]
  %v708 = vld [vmem:[#allocation3 + $0x38] sm:$0xff]
  %v709 = vld [vmem:[#allocation3 + $0x48] sm:$0xff]
  %v710 = vld [vmem:[#allocation3 + $0x50] sm:$0xff]
  %v711 = vld [vmem:[#allocation3 + $0x60] sm:$0xff]
  %v712 = vld [vmem:[#allocation3 + $0x68] sm:$0xff]
  %v713 = vld [vmem:[#allocation3 + $0x78] sm:$0xff]
  %v714 = vld [vmem:[#allocation3 + $0x80] sm:$0xff]
  %v715 = vld [vmem:[#allocation3 + $0x90] sm:$0xff]
  %v716 = vld [vmem:[#allocation3 + $0x98] sm:$0xff]
  %v717 = vld [vmem:[#allocation3 + $0xa8] sm:$0xff]
  %v718 = vld [vmem:[#allocation3 + $0xb0] sm:$0xff]
  %v719 = vld [vmem:[#allocation3 + $0xc0] sm:$0xff]
  %v720 = vld [vmem:[#allocation3 + $0xc8] sm:$0xff]
  %v721 = vld [vmem:[#allocation3 + $0xd8] sm:$0xff]
  %v722 = vld [vmem:[#allocation3 + $0xe0] sm:$0xff]
  %v723 = vld [vmem:[#allocation3 + $0xf0] sm:$0xff]
  %v724 = vld [vmem:[#allocation3 + $0xf8] sm:$0xff]
  %v725 = vld [vmem:[#allocation3 + $0x108] sm:$0xff]
  %v726 = vld [vmem:[#allocation3 + $0x110] sm:$0xff]
  %v727 = vld [vmem:[#allocation3 + $0x120] sm:$0xff]
  %v728 = vld [vmem:[#allocation3 + $0x128] sm:$0xff]
  %v729 = vld [vmem:[#allocation3 + $0x138] sm:$0xff]
  %v730 = vld [vmem:[#allocation3 + $0x140] sm:$0xff]
  %v731 = vld [vmem:[#allocation3 + $0x150] sm:$0xff]
  %v732 = vld [vmem:[#allocation3 + $0x158] sm:$0xff]
  %v733 = vld [vmem:[#allocation3 + $0x168] sm:$0xff]
  %v734 = vld [vmem:[#allocation3 + $0x170] sm:$0xff]
  %v735 = vmul.f32 %v703, 0.125
  %v736 = vmul.f32 %v704, 0.125
  %v737 = vmul.f32 %v705, 0.125
  %v738 = vmul.f32 %v706, 0.125
  %v739 = vmul.f32 %v707, 0.125
  %v740 = vmul.f32 %v708, 0.125
  %v741 = vmul.f32 %v709, 0.125
  %v742 = vmul.f32 %v710, 0.125
  %v743 = vmul.f32 %v711, 0.125
  %v744 = vmul.f32 %v712, 0.125
  %v745 = vmul.f32 %v713, 0.125
  %v746 = vmul.f32 %v714, 0.125
  %v747 = vmul.f32 %v715, 0.125
  %v748 = vmul.f32 %v716, 0.125
  %v749 = vmul.f32 %v717, 0.125
  %v750 = vmul.f32 %v718, 0.125
  %v751 = vmul.f32 %v719, 0.125
  %v752 = vmul.f32 %v720, 0.125
  %v753 = vmul.f32 %v721, 0.125
  %v754 = vmul.f32 %v722, 0.125
  %v755 = vmul.f32 %v723, 0.125
  %v756 = vmul.f32 %v724, 0.125
  %v757 = vmul.f32 %v725, 0.125
  %v758 = vmul.f32 %v726, 0.125
  %v759 = vmul.f32 %v727, 0.125
  %v760 = vmul.f32 %v728, 0.125
  %v761 = vmul.f32 %v729, 0.125
  %v762 = vmul.f32 %v730, 0.125
  %v763 = vmul.f32 %v731, 0.125
  %v764 = vmul.f32 %v732, 0.125
  %v765 = vmul.f32 %v733, 0.125
  %v766 = vmul.f32 %v734, 0.125
  %v767 = vld [vmem:[#allocation3 + $0x1] sm:$0xff]
  %v768 = vld [vmem:[#allocation3 + $0x9] sm:$0xff]
  %v769 = vld [vmem:[#allocation3 + $0x19] sm:$0xff]
  %v770 = vld [vmem:[#allocation3 + $0x21] sm:$0xff]
  %v771 = vld [vmem:[#allocation3 + $0x31] sm:$0xff]
  %v772 = vld [vmem:[#allocation3 + $0x39] sm:$0xff]
  %v773 = vld [vmem:[#allocation3 + $0x49] sm:$0xff]
  %v774 = vld [vmem:[#allocation3 + $0x51] sm:$0xff]
  %v775 = vld [vmem:[#allocation3 + $0x61] sm:$0xff]
  %v776 = vld [vmem:[#allocation3 + $0x69] sm:$0xff]
  %v777 = vld [vmem:[#allocation3 + $0x79] sm:$0xff]
  %v778 = vld [vmem:[#allocation3 + $0x81] sm:$0xff]
  %v779 = vld [vmem:[#allocation3 + $0x91] sm:$0xff]
  %v780 = vld [vmem:[#allocation3 + $0x99] sm:$0xff]
  %v781 = vld [vmem:[#allocation3 + $0xa9] sm:$0xff]
  %v782 = vld [vmem:[#allocation3 + $0xb1] sm:$0xff]
  %v783 = vld [vmem:[#allocation3 + $0xc1] sm:$0xff]
  %v784 = vld [vmem:[#allocation3 + $0xc9] sm:$0xff]
  %v785 = vld [vmem:[#allocation3 + $0xd9] sm:$0xff]
  %v786 = vld [vmem:[#allocation3 + $0xe1] sm:$0xff]
  %v787 = vld [vmem:[#allocation3 + $0xf1] sm:$0xff]
  %v788 = vld [vmem:[#allocation3 + $0xf9] sm:$0xff]
  %v789 = vld [vmem:[#allocation3 + $0x109] sm:$0xff]
  %v790 = vld [vmem:[#allocation3 + $0x111] sm:$0xff]
  %v791 = vld [vmem:[#allocation3 + $0x121] sm:$0xff]
  %v792 = vld [vmem:[#allocation3 + $0x129] sm:$0xff]
  %v793 = vld [vmem:[#allocation3 + $0x139] sm:$0xff]
  %v794 = vld [vmem:[#allocation3 + $0x141] sm:$0xff]
  %v795 = vld [vmem:[#allocation3 + $0x151] sm:$0xff]
  %v796 = vld [vmem:[#allocation3 + $0x159] sm:$0xff]
  %v797 = vld [vmem:[#allocation3 + $0x169] sm:$0xff]
  %v798 = vld [vmem:[#allocation3 + $0x171] sm:$0xff]
  %v799 = vmul.f32 %v767, 0.375
  %v800 = vmul.f32 %v768, 0.375
  %v801 = vmul.f32 %v769, 0.375
  %v802 = vmul.f32 %v770, 0.375
  %v803 = vmul.f32 %v771, 0.375
  %v804 = vmul.f32 %v772, 0.375
  %v805 = vmul.f32 %v773, 0.375
  %v806 = vmul.f32 %v774, 0.375
  %v807 = vmul.f32 %v775, 0.375
  %v808 = vmul.f32 %v776, 0.375
  %v809 = vmul.f32 %v777, 0.375
  %v810 = vmul.f32 %v778, 0.375
  %v811 = vmul.f32 %v779, 0.375
  %v812 = vmul.f32 %v780, 0.375
  %v813 = vmul.f32 %v781, 0.375
  %v814 = vmul.f32 %v782, 0.375
  %v815 = vmul.f32 %v783, 0.375
  %v816 = vmul.f32 %v784, 0.375
  %v817 = vmul.f32 %v785, 0.375
  %v818 = vmul.f32 %v786, 0.375
  %v819 = vmul.f32 %v787, 0.375
  %v820 = vmul.f32 %v788, 0.375
  %v821 = vmul.f32 %v789, 0.375
  %v822 = vmul.f32 %v790, 0.375
  %v823 = vmul.f32 %v791, 0.375
  %v824 = vmul.f32 %v792, 0.375
  %v825 = vmul.f32 %v793, 0.375
  %v826 = vmul.f32 %v794, 0.375
  %v827 = vmul.f32 %v795, 0.375
  %v828 = vmul.f32 %v796, 0.375
  %v829 = vmul.f32 %v797, 0.375
  %v830 = vmul.f32 %v798, 0.375
  %v831 = vadd.f32 %v735, %v799
  %v832 = vadd.f32 %v736, %v800
  %v833 = vadd.f32 %v737, %v801
  %v834 = vadd.f32 %v738, %v802
  %v835 = vadd.f32 %v739, %v803
  %v836 = vadd.f32 %v740, %v804
  %v837 = vadd.f32 %v741, %v805
  %v838 = vadd.f32 %v742, %v806
  %v839 = vadd.f32 %v743, %v807
  %v840 = vadd.f32 %v744, %v808
  %v841 = vadd.f32 %v745, %v809
  %v842 = vadd.f32 %v746, %v810
  %v843 = vadd.f32 %v747, %v811
  %v844 = vadd.f32 %v748, %v812
  %v845 = vadd.f32 %v749, %v813
  %v846 = vadd.f32 %v750, %v814
  %v847 = vadd.f32 %v751, %v815
  %v848 = vadd.f32 %v752, %v816
  %v849 = vadd.f32 %v753, %v817
  %v850 = vadd.f32 %v754, %v818
  %v851 = vadd.f32 %v755, %v819
  %v852 = vadd.f32 %v756, %v820
  %v853 = vadd.f32 %v757, %v821
  %v854 = vadd.f32 %v758, %v822
  %v855 = vadd.f32 %v759, %v823
  %v856 = vadd.f32 %v760, %v824
  %v857 = vadd.f32 %v761, %v825
  %v858 = vadd.f32 %v762, %v826
  %v859 = vadd.f32 %v763, %v827
  %v860 = vadd.f32 %v764, %v828
  %v861 = vadd.f32 %v765, %v829
  %v862 = vadd.f32 %v766, %v830
  %v863 = vld [vmem:[#allocation3 + $0x2] sm:$0xff]
  %v864 = vld [vmem:[#allocation3 + $0xa] sm:$0xff]
  %v865 = vld [vmem:[#allocation3 + $0x1a] sm:$0xff]
  %v866 = vld [vmem:[#allocation3 + $0x22] sm:$0xff]
  %v867 = vld [vmem:[#allocation3 + $0x32] sm:$0xff]
  %v868 = vld [vmem:[#allocation3 + $0x3a] sm:$0xff]
  %v869 = vld [vmem:[#allocation3 + $0x4a] sm:$0xff]
  %v870 = vld [vmem:[#allocation3 + $0x52] sm:$0xff]
  %v871 = vld [vmem:[#allocation3 + $0x62] sm:$0xff]
  %v872 = vld [vmem:[#allocation3 + $0x6a] sm:$0xff]
  %v873 = vld [vmem:[#allocation3 + $0x7a] sm:$0xff]
  %v874 = vld [vmem:[#allocation3 + $0x82] sm:$0xff]
  %v875 = vld [vmem:[#allocation3 + $0x92] sm:$0xff]
  %v876 = vld [vmem:[#allocation3 + $0x9a] sm:$0xff]
  %v877 = vld [vmem:[#allocation3 + $0xaa] sm:$0xff]
  %v878 = vld [vmem:[#allocation3 + $0xb2] sm:$0xff]
  %v879 = vld [vmem:[#allocation3 + $0xc2] sm:$0xff]
  %v880 = vld [vmem:[#allocation3 + $0xca] sm:$0xff]
  %v881 = vld [vmem:[#allocation3 + $0xda] sm:$0xff]
  %v882 = vld [vmem:[#allocation3 + $0xe2] sm:$0xff]
  %v883 = vld [vmem:[#allocation3 + $0xf2] sm:$0xff]
  %v884 = vld [vmem:[#allocation3 + $0xfa] sm:$0xff]
  %v885 = vld [vmem:[#allocation3 + $0x10a] sm:$0xff]
  %v886 = vld [vmem:[#allocation3 + $0x112] sm:$0xff]
  %v887 = vld [vmem:[#allocation3 + $0x122] sm:$0xff]
  %v888 = vld [vmem:[#allocation3 + $0x12a] sm:$0xff]
  %v889 = vld [vmem:[#allocation3 + $0x13a] sm:$0xff]
  %v890 = vld [vmem:[#allocation3 + $0x142] sm:$0xff]
  %v891 = vld [vmem:[#allocation3 + $0x152] sm:$0xff]
  %v892 = vld [vmem:[#allocation3 + $0x15a] sm:$0xff]
  %v893 = vld [vmem:[#allocation3 + $0x16a] sm:$0xff]
  %v894 = vld [vmem:[#allocation3 + $0x172] sm:$0xff]
  %v895 = vmul.f32 %v863, 0.375
  %v896 = vmul.f32 %v864, 0.375
  %v897 = vmul.f32 %v865, 0.375
  %v898 = vmul.f32 %v866, 0.375
  %v899 = vmul.f32 %v867, 0.375
  %v900 = vmul.f32 %v868, 0.375
  %v901 = vmul.f32 %v869, 0.375
  %v902 = vmul.f32 %v870, 0.375
  %v903 = vmul.f32 %v871, 0.375
  %v904 = vmul.f32 %v872, 0.375
  %v905 = vmul.f32 %v873, 0.375
  %v906 = vmul.f32 %v874, 0.375
  %v907 = vmul.f32 %v875, 0.375
  %v908 = vmul.f32 %v876, 0.375
  %v909 = vmul.f32 %v877, 0.375
  %v910 = vmul.f32 %v878, 0.375
  %v911 = vmul.f32 %v879, 0.375
  %v912 = vmul.f32 %v880, 0.375
  %v913 = vmul.f32 %v881, 0.375
  %v914 = vmul.f32 %v882, 0.375
  %v915 = vmul.f32 %v883, 0.375
  %v916 = vmul.f32 %v884, 0.375
  %v917 = vmul.f32 %v885, 0.375
  %v918 = vmul.f32 %v886, 0.375
  %v919 = vmul.f32 %v887, 0.375
  %v920 = vmul.f32 %v888, 0.375
  %v921 = vmul.f32 %v889, 0.375
  %v922 = vmul.f32 %v890, 0.375
  %v923 = vmul.f32 %v891, 0.375
  %v924 = vmul.f32 %v892, 0.375
  %v925 = vmul.f32 %v893, 0.375
  %v926 = vmul.f32 %v894, 0.375
  %v927 = vadd.f32 %v831, %v895
  %v928 = vadd.f32 %v832, %v896
  %v929 = vadd.f32 %v833, %v897
  %v930 = vadd.f32 %v834, %v898
  %v931 = vadd.f32 %v835, %v899
  %v932 = vadd.f32 %v836, %v900
  %v933 = vadd.f32 %v837, %v901
  %v934 = vadd.f32 %v838, %v902
  %v935 = vadd.f32 %v839, %v903
  %v936 = vadd.f32 %v840, %v904
  %v937 = vadd.f32 %v841, %v905
  %v938 = vadd.f32 %v842, %v906
  %v939 = vadd.f32 %v843, %v907
  %v940 = vadd.f32 %v844, %v908
  %v941 = vadd.f32 %v845, %v909
  %v942 = vadd.f32 %v846, %v910
  %v943 = vadd.f32 %v847, %v911
  %v944 = vadd.f32 %v848, %v912
  %v945 = vadd.f32 %v849, %v913
  %v946 = vadd.f32 %v850, %v914
  %v947 = vadd.f32 %v851, %v915
  %v948 = vadd.f32 %v852, %v916
  %v949 = vadd.f32 %v853, %v917
  %v950 = vadd.f32 %v854, %v918
  %v951 = vadd.f32 %v855, %v919
  %v952 = vadd.f32 %v856, %v920
  %v953 = vadd.f32 %v857, %v921
  %v954 = vadd.f32 %v858, %v922
  %v955 = vadd.f32 %v859, %v923
  %v956 = vadd.f32 %v860, %v924
  %v957 = vadd.f32 %v861, %v925
  %v958 = vadd.f32 %v862, %v926
  %v959 = vld [vmem:[#allocation3 + $0x3] sm:$0xff]
  %v960 = vld [vmem:[#allocation3 + $0xb] sm:$0xff]
  %v961 = vld [vmem:[#allocation3 + $0x1b] sm:$0xff]
  %v962 = vld [vmem:[#allocation3 + $0x23] sm:$0xff]
  %v963 = vld [vmem:[#allocation3 + $0x33] sm:$0xff]
  %v964 = vld [vmem:[#allocation3 + $0x3b] sm:$0xff]
  %v965 = vld [vmem:[#allocation3 + $0x4b] sm:$0xff]
  %v966 = vld [vmem:[#allocation3 + $0x53] sm:$0xff]
  %v967 = vld [vmem:[#allocation3 + $0x63] sm:$0xff]
  %v968 = vld [vmem:[#allocation3 + $0x6b] sm:$0xff]
  %v969 = vld [vmem:[#allocation3 + $0x7b] sm:$0xff]
  %v970 = vld [vmem:[#allocation3 + $0x83] sm:$0xff]
  %v971 = vld [vmem:[#allocation3 + $0x93] sm:$0xff]
  %v972 = vld [vmem:[#allocation3 + $0x9b] sm:$0xff]
  %v973 = vld [vmem:[#allocation3 + $0xab] sm:$0xff]
  %v974 = vld [vmem:[#allocation3 + $0xb3] sm:$0xff]
  %v975 = vld [vmem:[#allocation3 + $0xc3] sm:$0xff]
  %v976 = vld [vmem:[#allocation3 + $0xcb] sm:$0xff]
  %v977 = vld [vmem:[#allocation3 + $0xdb] sm:$0xff]
  %v978 = vld [vmem:[#allocation3 + $0xe3] sm:$0xff]
  %v979 = vld [vmem:[#allocation3 + $0xf3] sm:$0xff]
  %v980 = vld [vmem:[#allocation3 + $0xfb] sm:$0xff]
  %v981 = vld [vmem:[#allocation3 + $0x10b] sm:$0xff]
  %v982 = vld [vmem:[#allocation3 + $0x113] sm:$0xff]
  %v983 = vld [vmem:[#allocation3 + $0x123] sm:$0xff]
  %v984 = vld [vmem:[#allocation3 + $0x12b] sm:$0xff]
  %v985 = vld [vmem:[#allocation3 + $0x13b] sm:$0xff]
  %v986 = vld [vmem:[#allocation3 + $0x143] sm:$0xff]
  %v987 = vld [vmem:[#allocation3 + $0x153] sm:$0xff]
  %v988 = vld [vmem:[#allocation3 + $0x15b] sm:$0xff]
  %v989 = vld [vmem:[#allocation3 + $0x16b] sm:$0xff]
  %v990 = vld [vmem:[#allocation3 + $0x173] sm:$0xff]
  %v991 = vmul.f32 %v959, 0.125
  %v992 = vmul.f32 %v960, 0.125
  %v993 = vmul.f32 %v961, 0.125
  %v994 = vmul.f32 %v962, 0.125
  %v995 = vmul.f32 %v963, 0.125
  %v996 = vmul.f32 %v964, 0.125
  %v997 = vmul.f32 %v965, 0.125
  %v998 = vmul.f32 %v966, 0.125
  %v999 = vmul.f32 %v967, 0.125
  %v1000 = vmul.f32 %v968, 0.125
  %v1001 = vmul.f32 %v969, 0.125
  %v1002 = vmul.f32 %v970, 0.125
  %v1003 = vmul.f32 %v971, 0.125
  %v1004 = vmul.f32 %v972, 0.125
  %v1005 = vmul.f32 %v973, 0.125
  %v1006 = vmul.f32 %v974, 0.125
  %v1007 = vmul.f32 %v975, 0.125
  %v1008 = vmul.f32 %v976, 0.125
  %v1009 = vmul.f32 %v977, 0.125
  %v1010 = vmul.f32 %v978, 0.125
  %v1011 = vmul.f32 %v979, 0.125
  %v1012 = vmul.f32 %v980, 0.125
  %v1013 = vmul.f32 %v981, 0.125
  %v1014 = vmul.f32 %v982, 0.125
  %v1015 = vmul.f32 %v983, 0.125
  %v1016 = vmul.f32 %v984, 0.125
  %v1017 = vmul.f32 %v985, 0.125
  %v1018 = vmul.f32 %v986, 0.125
  %v1019 = vmul.f32 %v987, 0.125
  %v1020 = vmul.f32 %v988, 0.125
  %v1021 = vmul.f32 %v989, 0.125
  %v1022 = vmul.f32 %v990, 0.125
  %v1023 = vadd.f32 %v927, %v991
  %v1024 = vadd.f32 %v928, %v992
  %v1025 = vadd.f32 %v929, %v993
  %v1026 = vadd.f32 %v930, %v994
  %v1027 = vadd.f32 %v931, %v995
  %v1028 = vadd.f32 %v932, %v996
  %v1029 = vadd.f32 %v933, %v997
  %v1030 = vadd.f32 %v934, %v998
  %v1031 = vadd.f32 %v935, %v999
  %v1032 = vadd.f32 %v936, %v1000
  %v1033 = vadd.f32 %v937, %v1001
  %v1034 = vadd.f32 %v938, %v1002
  %v1035 = vadd.f32 %v939, %v1003
  %v1036 = vadd.f32 %v940, %v1004
  %v1037 = vadd.f32 %v941, %v1005
  %v1038 = vadd.f32 %v942, %v1006
  %v1039 = vadd.f32 %v943, %v1007
  %v1040 = vadd.f32 %v944, %v1008
  %v1041 = vadd.f32 %v945, %v1009
  %v1042 = vadd.f32 %v946, %v1010
  %v1043 = vadd.f32 %v947, %v1011
  %v1044 = vadd.f32 %v948, %v1012
  %v1045 = vadd.f32 %v949, %v1013
  %v1046 = vadd.f32 %v950, %v1014
  %v1047 = vadd.f32 %v951, %v1015
  %v1048 = vadd.f32 %v952, %v1016
  %v1049 = vadd.f32 %v953, %v1017
  %v1050 = vadd.f32 %v954, %v1018
  %v1051 = vadd.f32 %v955, %v1019
  %v1052 = vadd.f32 %v956, %v1020
  %v1053 = vadd.f32 %v957, %v1021
  %v1054 = vadd.f32 %v958, %v1022
  %1055 = vst.msk [vmem:[%s1] sm:$0xff] %vm8, %v1023
  %1056 = vst.msk [vmem:[%s1 + $0x8] sm:$0xff] %vm8, %v1024
  %1057 = vst.msk [vmem:[%s1 + $0x10] sm:$0xff] %vm8, %v1025
  %1058 = vst.msk [vmem:[%s1 + $0x18] sm:$0xff] %vm8, %v1026
  %1059 = vst.msk [vmem:[%s1 + $0x20] sm:$0xff] %vm8, %v1027
  %1060 = vst.msk [vmem:[%s1 + $0x28] sm:$0xff] %vm8, %v1028
  %1061 = vst.msk [vmem:[%s1 + $0x30] sm:$0xff] %vm8, %v1029
  %1062 = vst.msk [vmem:[%s1 + $0x38] sm:$0xff] %vm8, %v1030
  %1063 = vst.msk [vmem:[%s1 + $0x40] sm:$0xff] %vm8, %v1031
  %1064 = vst.msk [vmem:[%s1 + $0x48] sm:$0xff] %vm8, %v1032
  %1065 = vst.msk [vmem:[%s1 + $0x50] sm:$0xff] %vm8, %v1033
  %1066 = vst.msk [vmem:[%s1 + $0x58] sm:$0xff] %vm8, %v1034
  %1067 = vst.msk [vmem:[%s1 + $0x60] sm:$0xff] %vm8, %v1035
  %1068 = vst.msk [vmem:[%s1 + $0x68] sm:$0xff] %vm8, %v1036
  %1069 = vst.msk [vmem:[%s1 + $0x70] sm:$0xff] %vm8, %v1037
  %1070 = vst.msk [vmem:[%s1 + $0x78] sm:$0xff] %vm8, %v1038
  %1071 = vst.msk [vmem:[%s1 + $0x80] sm:$0xff] %vm8, %v1039
  %1072 = vst.msk [vmem:[%s1 + $0x88] sm:$0xff] %vm8, %v1040
  %1073 = vst.msk [vmem:[%s1 + $0x90] sm:$0xff] %vm8, %v1041
  %1074 = vst.msk [vmem:[%s1 + $0x98] sm:$0xff] %vm8, %v1042
  %1075 = vst.msk [vmem:[%s1 + $0xa0] sm:$0xff] %vm8, %v1043
  %1076 = vst.msk [vmem:[%s1 + $0xa8] sm:$0xff] %vm8, %v1044
  %1077 = vst.msk [vmem:[%s1 + $0xb0] sm:$0xff] %vm8, %v1045
  %1078 = vst.msk [vmem:[%s1 + $0xb8] sm:$0xff] %vm8, %v1046
  %1079 = vst.msk [vmem:[%s1 + $0xc0] sm:$0xff] %vm8, %v1047
  %1080 = vst.msk [vmem:[%s1 + $0xc8] sm:$0xff] %vm8, %v1048
  %1081 = vst.msk [vmem:[%s1 + $0xd0] sm:$0xff] %vm8, %v1049
  %1082 = vst.msk [vmem:[%s1 + $0xd8] sm:$0xff] %vm8, %v1050
  %1083 = vst.msk [vmem:[%s1 + $0xe0] sm:$0xff] %vm8, %v1051
  %1084 = vst.msk [vmem:[%s1 + $0xe8] sm:$0xff] %vm8, %v1052
  %1085 = vst.msk [vmem:[%s1 + $0xf0] sm:$0xff] %vm8, %v1053
  %1086 = vst.msk [vmem:[%s1 + $0xf8] sm:$0xff] %vm8, %v1054
  // Predicated region
  $region6: #{tpu_custom_call.1} parent=0 // pred_check
    _
  $region7: #{tpu_custom_call.1} parent=0 // pred_check_branch
    %1088 = sbr.rel (0) target = $region9
  $region8: #{tpu_custom_call.1} parent=0 // pred_region
    _
  $region9: #{tpu_custom_call.1} parent=0 // pred_fallthru
    _
  // Predicated region
  $region10: #{tpu_custom_call.1} parent=0 // pred_check
    _
  $region11: #{tpu_custom_call.1} parent=0 // pred_check_branch
    %1090 = sbr.rel (0) target = $region13
  $region12: #{tpu_custom_call.1} parent=0 // pred_region
    _
  $region13: #{tpu_custom_call.1} parent=0 // pred_fallthru
    _

</llo_original>
